<compile_context>
chip_gen: v7x
topology: tpu7x:2x2x1
jax: 0.10.0
libtpu: 0.0.40
codegen_flags: <defaults>
</compile_context>

<pallas_src>
import functools

import jax
import jax.numpy as jnp
from jax import lax
from jax.experimental import pallas as pl
from jax.experimental.pallas import tpu as pltpu

_TI = 128                      # compute sub-tile rows (sublane-friendly)
_LANE = 128                    # j chunk width (lane axis)
_SUBLANE = 8
_SPLAT = _SUBLANE * _LANE      # lane-dense partial-output splat size
_BF16_BATCH_MAX = 4            # bf16-H only while the per-b cast beats 2x HBM
_H_BLOCK_BUDGET = 8 * 1024 * 1024   # double-buffered H block budget (v7x-safe)
_MAX_SUB_TILES = 4             # DMA block <= 4 * 128 rows


def _round_up(x, m):
    return (x + m - 1) // m * m


def _cdiv(a, b):
    return (a + b - 1) // b


def _d_rule_kernel(yp_ref, h_ref, w_ref, out_ref, *, sub, nj):
    """One grid step = (row-block r, batch element b).

    yp_ref : (B, Nj)           f32        padded y_pred (j view), resident
    h_ref  : (sub*128, Nj)     bf16|f32   H row-block r (DMA'd once per r,
                                          reused across the inner b steps)
    w_ref  : (1, sub*128, 1)   f32        (branches * y_pred)[b] for block r's rows
    out_ref: (1, 8, 128)       f32        lane-dense partial, accumulated over b
    """
    b = pl.program_id(1)

    @pl.when(b == 0)
    def _():
        out_ref[...] = jnp.zeros_like(out_ref)

    block_acc = jnp.zeros((1, 1), jnp.float32)

    for t in range(sub):                       # static: 128-row compute sub-tiles
        row0 = t * _TI

        # chunk 0 (static offset) initializes the running max exactly.
        h0 = h_ref[pl.ds(row0, _TI), pl.ds(0, _LANE)].astype(jnp.float32)
        y0 = yp_ref[pl.ds(b, 1), pl.ds(0, _LANE)]          # (1, 128)
        run = y0 * h0                                      # (128, 128) live tile

        if nj > 1:
            def jbody(c, r):
                start = pl.multiple_of(c * _LANE, _LANE)
                hc = h_ref[pl.ds(row0, _TI), pl.ds(start, _LANE)].astype(jnp.float32)
                yc = yp_ref[pl.ds(b, 1), pl.ds(start, _LANE)]
                return jnp.maximum(r, yc * hc)             # VPU mul + max
            run = lax.fori_loop(1, nj, jbody, run, unroll=(nj <= 8))

        # One short cross-lane max per row (XLU), then the fused
        # sum_i w_i * (1 - max_i) contribution for this (block, b).
        maxv = jnp.max(run, axis=1, keepdims=True)         # (128, 1)
        w_col = w_ref[0, pl.ds(row0, _TI), :]              # (128, 1), not pinned
        block_acc = block_acc + jnp.sum(w_col * (1.0 - maxv), keepdims=True)

    out_ref[...] = out_ref[...] + jnp.broadcast_to(block_acc, out_ref.shape)


def make_d_rule_loss(H_raw):
    """__init__-equivalent: preprocess H once, return forward(y_pred, y_true)."""
    H = jnp.asarray(H_raw, dtype=jnp.float32)               # (N, N)
    assert H.ndim == 2 and H.shape[0] == H.shape[1], "H must be (N, N)"
    N = int(H.shape[0])

    branches = jnp.minimum(jnp.sum(H, axis=1), 1.0)          # (N,)
    branch_count = jnp.sum(branches)                         # () ; ==0 divides by 0 (matches reference)
    # bf16 storage is only exact for bf16-representable entries (0/1 hierarchies).
    bf16_exact = bool(jnp.all(H.astype(jnp.bfloat16).astype(jnp.float32) == H))

    n_j = _round_up(max(N, _LANE), _LANE)                    # lane/column padding
    nj = n_j // _LANE
    n_row_tiles = _cdiv(N, _TI)

    plans = {}                                               # B -> plan (built once per batch size)

    def _plan(B):
        if B in plans:
            return plans[B]
        use_bf16 = bf16_exact and (B <= _BF16_BATCH_MAX)
        h_dtype = jnp.bfloat16 if use_bf16 else jnp.float32
        itemsize = 2 if use_bf16 else 4
        # DMA row-block: as big as the (v7x-safe) VMEM budget allows, <= 4 sub-tiles,
        # but keep >= 2 row blocks whenever possible so both v7x TCs get work.
        budget_tiles = max(1, _H_BLOCK_BUDGET // (2 * _TI * n_j * itemsize))
        sub = max(1, min(_MAX_SUB_TILES, budget_tiles, n_row_tiles))
        if n_row_tiles >= 2:
            sub = max(1, min(sub, n_row_tiles // 2))
        r_blk = sub * _TI
        num_blocks = _cdiv(n_row_tiles, sub)
        rows_pad = num_blocks * r_blk
        # Padded rows of H are zero AND zero-weighted -> contribute exactly 0.
        # Padded columns multiply to 0 (exact for y_pred >= 0, i.e. post-sigmoid).
        h_pad = jnp.pad(H.astype(h_dtype), ((0, rows_pad - N), (0, n_j - N)))
        plans[B] = (h_pad, itemsize, sub, r_blk, num_blocks, rows_pad)
        return plans[B]

    def forward(y_pred, y_true=None):
        # y_true accepted for API parity; unused by the reference forward.
        yp = jnp.asarray(y_pred, dtype=jnp.float32)
        B = int(yp.shape[0])
        assert int(yp.shape[1]) == N
        h_pad, itemsize, sub, r_blk, num_blocks, rows_pad = _plan(B)

        yp_pad = jnp.pad(yp, ((0, 0), (0, n_j - N)))                     # (B, Nj)
        # i-view weights W[b, i] = branches[i] * y_pred[b, i]; the trailing
        # singleton lane dim lets the kernel slice a (128, 1) column per
        # (block, b) without any dynamic lane indexing.
        w = branches[None, :] * yp                                       # (B, N)
        w3 = jnp.pad(w, ((0, 0), (0, rows_pad - N)))[:, :, None]         # (B, rows_pad, 1)

        # Explicit VMEM budgeting (v7x has 64 MiB physical, 32 MiB scoped default;
        # v5e's scoped default is only 16 MiB).  Only raise the limit when needed.
        vmem_need = (2 * r_blk * n_j * itemsize          # double-buffered H block
                     + 2 * B * n_j * 4                   # resident y_pred
                     + 2 * r_blk * _LANE * 4             # w column block (lane-padded)
                     + 2 * _SPLAT * 4)                   # output block
        vmem_limit = (vmem_need + (4 << 20)) if vmem_need > (12 << 20) else None

        kernel = functools.partial(_d_rule_kernel, sub=sub, nj=nj)

        cost = pl.CostEstimate(
            flops=3 * B * rows_pad * n_j,
            transcendentals=0,
            bytes_accessed=rows_pad * n_j * itemsize + B * n_j * 4
            + B * rows_pad * 4 + num_blocks * _SPLAT * 4,
        )

        partials = pl.pallas_call(
            kernel,
            out_shape=jax.ShapeDtypeStruct((num_blocks, _SUBLANE, _LANE), jnp.float32),
            grid=(num_blocks, B),
            in_specs=[
                # y_pred: resident across the whole grid (constant block index).
                pl.BlockSpec((B, n_j), lambda r, b: (0, 0)),
                # H row-block: index depends only on r -> fetched once per row
                # block, reused for all B inner (b) steps.
                pl.BlockSpec((r_blk, n_j), lambda r, b: (r, 0)),
                # Per-(b, block) weight column (tiny DMA each step).
                pl.BlockSpec((1, r_blk, 1), lambda r, b: (b, r, 0)),
            ],
            out_specs=pl.BlockSpec((1, _SUBLANE, _LANE), lambda r, b: (r, 0, 0)),
            compiler_params=pltpu.CompilerParams(
                dimension_semantics=("parallel", "arbitrary"),
                vmem_limit_bytes=vmem_limit,
            ),
            cost_estimate=cost,
        )(yp_pad, h_pad, w3)

        # Single fused normalization; the 1/_SPLAT splat factor is a power of
        # two, so folding it here is exact and avoids a strided gather.
        inv = 1.0 / (branch_count * (B * float(_SPLAT)))
        return jnp.sum(partials) * inv

    return jax.jit(forward)


def _d_rule_loss_ref(y_pred, H_raw):
    """Pure-JAX reference mirroring the PyTorch code, for verification."""
    H = jnp.asarray(H_raw, dtype=jnp.float32)
    branches = jnp.minimum(jnp.sum(H, axis=1), 1.0)
    branch_count = jnp.sum(branches)
    yp = jnp.asarray(y_pred, dtype=jnp.float32)
    B = yp.shape[0]
    max_values = jnp.max(yp[:, None, :] * H[None, :, :], axis=2)
    s_branch = branches[None, :] * yp
    losses = (jnp.sum(s_branch, axis=1)
              - jnp.sum(s_branch * max_values, axis=1)) / branch_count
    return jnp.sum(losses) / B


def _make_tree_H(N):
    # Binary tree over N nodes: H[i, j] = 1 iff j is a child of i.
    H = [[0.0] * N for _ in range(N)]
    for i in range(N):
        for c in (2 * i + 1, 2 * i + 2):
            if c < N:
                H[i][c] = 1.0
    return jnp.asarray(H, dtype=jnp.float32)


if __name__ == "__main__":
    key = jax.random.PRNGKey(0)
    ok = True
    # Small cases covering: tiny N, non-aligned N (column/row padding),
    # multi-block + multi-chunk bf16 path, and the f32 (B > 4) path.
    for (B, N) in [(2, 16), (3, 20), (4, 256), (6, 384)]:
        key, k1, k2 = jax.random.split(key, 3)
        H_raw = _make_tree_H(N)
        y_pred = jax.nn.sigmoid(jax.random.normal(k1, (B, N), dtype=jnp.float32))
        y_true = (jax.random.uniform(k2, (B, N)) > 0.5).astype(jnp.float32)  # unused

        loss_fn = make_d_rule_loss(H_raw)
        loss = jax.block_until_ready(loss_fn(y_pred, y_true))
        ref = jax.block_until_ready(_d_rule_loss_ref(y_pred, H_raw))
        if not jnp.allclose(loss, ref, rtol=1e-5, atol=1e-5):
            ok = False
            print("MISMATCH", B, N, float(loss), float(ref))

    if ok:
        print("KERNEL_OK")
</pallas_src>

<mosaic_0001>
module attributes {stable_mosaic.version = 11 : i64} {
  func.func @_d_rule_kernel(%arg0: i32, %arg1: i32, %arg2: memref<2x128xf32, #tpu.memory_space<vmem>>, %arg3: memref<128x128xbf16, #tpu.memory_space<vmem>>, %arg4: memref<1x128x1xf32, #tpu.memory_space<vmem>>, %arg5: memref<1x8x128xf32, #tpu.memory_space<vmem>>) attributes {dimension_semantics = [#tpu.dimension_semantics<parallel>, #tpu.dimension_semantics<arbitrary>], iteration_bounds = array<i64: 1, 2>, scalar_prefetch = 0 : i64, scratch_operands = 0 : i64, tpu.core_type = #tpu.core_type<tc>, window_params = [{pipeline_mode = #tpu.pipeline_mode<synchronous>, transform_indices = @transform_0, window_bounds = array<i64: 2, 128>}, {transform_indices = @transform_1, window_bounds = array<i64: 128, 128>}, {transform_indices = @transform_2, window_bounds = array<i64: 1, 128, 1>}, {transform_indices = @transform_3, window_bounds = array<i64: 1, 8, 128>}]} {
    %c0_i32 = arith.constant 0 : i32
    %0 = arith.cmpi eq, %arg1, %c0_i32 : i32
    %1 = arith.extui %0 : i1 to i32
    %c0_i32_0 = arith.constant 0 : i32
    %2 = arith.cmpi ne, %1, %c0_i32_0 : i32
    scf.if %2 {
      %cst_15 = arith.constant 0.000000e+00 : f32
      %28 = vector.broadcast %cst_15 : f32 to vector<1x8x128xf32>
      %c0_16 = arith.constant 0 : index
      %c0_17 = arith.constant 0 : index
      %c0_18 = arith.constant 0 : index
      %29 = vector.load %arg5[%c0_16, %c0_17, %c0_18] : memref<1x8x128xf32, #tpu.memory_space<vmem>>, vector<1x8x128xf32>
      tpu.vector_store %arg5[%c0_16, %c0_17, %c0_18], %28 {strides = array<i32>} : memref<1x8x128xf32, #tpu.memory_space<vmem>>, vector<1x8x128xf32>,
    } else {
    }
    %cst = arith.constant 0.000000e+00 : f32
    %3 = vector.broadcast %cst : f32 to vector<1x1xf32>
    %c0 = arith.constant 0 : index
    %c0_1 = arith.constant 0 : index
    %4 = vector.load %arg3[%c0, %c0_1] : memref<128x128xbf16, #tpu.memory_space<vmem>>, vector<128x128xbf16>
    %5 = arith.extf %4 : vector<128x128xbf16> to vector<128x128xf32>
    %6 = arith.index_cast %arg1 : i32 to index
    %c0_2 = arith.constant 0 : index
    %7 = vector.load %arg2[%6, %c0_2] : memref<2x128xf32, #tpu.memory_space<vmem>>, vector<1x128xf32>
    %8 = vector.broadcast %7 : vector<1x128xf32> to vector<128x128xf32>
    %9 = arith.mulf %8, %5 : vector<128x128xf32>
    %cst_3 = arith.constant dense<0xFF800000> : vector<128xf32>
    %10 = vector.multi_reduction <maximumf>, %9, %cst_3 [1] : vector<128x128xf32> to vector<128xf32>
    %11 = vector.shape_cast %10 : vector<128xf32> to vector<128x1xf32>
    %c0_4 = arith.constant 0 : index
    %c0_5 = arith.constant 0 : index
    %c0_6 = arith.constant 0 : index
    %12 = vector.load %arg4[%c0_4, %c0_5, %c0_6] : memref<1x128x1xf32, #tpu.memory_space<vmem>>, vector<1x128x1xf32>
    %13 = vector.shape_cast %12 : vector<1x128x1xf32> to vector<128x1xf32>
    %cst_7 = arith.constant 1.000000e+00 : f32
    %14 = vector.broadcast %cst_7 : f32 to vector<128x1xf32>
    %15 = arith.subf %14, %11 : vector<128x1xf32>
    %16 = arith.mulf %13, %15 : vector<128x1xf32>
    %17 = vector.shape_cast %16 : vector<128x1xf32> to vector<1x128x1xf32>
    %cst_8 = arith.constant dense<0.000000e+00> : vector<1xf32>
    %18 = vector.multi_reduction <add>, %17, %cst_8 [1, 2] : vector<1x128x1xf32> to vector<1xf32>
    %19 = vector.shape_cast %18 : vector<1xf32> to vector<1x1x1xf32>
    %20 = vector.extract %19[0, 0, 0] : f32 from vector<1x1x1xf32>
    %21 = vector.broadcast %20 : f32 to vector<1x1xf32>
    %22 = arith.addf %3, %21 : vector<1x1xf32>
    %c0_9 = arith.constant 0 : index
    %c0_10 = arith.constant 0 : index
    %c0_11 = arith.constant 0 : index
    %23 = vector.load %arg5[%c0_9, %c0_10, %c0_11] : memref<1x8x128xf32, #tpu.memory_space<vmem>>, vector<1x8x128xf32>
    %24 = vector.shape_cast %22 : vector<1x1xf32> to vector<1x1x1xf32>
    %25 = vector.broadcast %24 : vector<1x1x1xf32> to vector<1x8x128xf32>
    %26 = arith.addf %23, %25 : vector<1x8x128xf32>
    %c0_12 = arith.constant 0 : index
    %c0_13 = arith.constant 0 : index
    %c0_14 = arith.constant 0 : index
    %27 = vector.load %arg5[%c0_12, %c0_13, %c0_14] : memref<1x8x128xf32, #tpu.memory_space<vmem>>, vector<1x8x128xf32>
    tpu.vector_store %arg5[%c0_12, %c0_13, %c0_14], %26 {strides = array<i32>} : memref<1x8x128xf32, #tpu.memory_space<vmem>>, vector<1x8x128xf32>,
    return
  }
  func.func @transform_0(%arg0: i32, %arg1: i32) -> (i32, i32) {
    %c0_i32 = arith.constant 0 : i32
    %c0_i32_0 = arith.constant 0 : i32
    %c0_i32_1 = arith.constant 0 : i32
    return %c0_i32, %c0_i32_0 : i32, i32
  }
  func.func @transform_1(%arg0: i32, %arg1: i32) -> (i32, i32) {
    %c0_i32 = arith.constant 0 : i32
    %c0_i32_0 = arith.constant 0 : i32
    return %arg0, %c0_i32 : i32, i32
  }
  func.func @transform_2(%arg0: i32, %arg1: i32) -> (i32, i32, i32) {
    %c0_i32 = arith.constant 0 : i32
    %c0_i32_0 = arith.constant 0 : i32
    return %arg1, %arg0, %c0_i32 : i32, i32, i32
  }
  func.func @transform_3(%arg0: i32, %arg1: i32) -> (i32, i32, i32) {
    %c0_i32 = arith.constant 0 : i32
    %c0_i32_0 = arith.constant 0 : i32
    %c0_i32_1 = arith.constant 0 : i32
    return %arg0, %c0_i32, %c0_i32_0 : i32, i32, i32
  }
}

</mosaic_0001>

<llo_original>
// kernel: forward.1
$region0: #{forward.1}
  #allocation0 [shape = 'u32[]', space=smem, size = 0x4, offset = 0x4, fixed_abs, tag = 'smem constant byte address 0x4 - core index']
  #allocation1 [shape = 'u32[144,128]{1,0:T(1,128)}', space=vmem, size = 0x12000, scoped, tag = 'internal scratch']
  %s0 = inlined_call_operand.vmem [shape: f32[2,128], index: 0, kind: input, shape index: {}]
  %s1 = inlined_call_operand.vmem [shape: bf16[128,128], index: 1, kind: input, shape index: {}]
  %s2 = inlined_call_operand.vmem [shape: f32[2,128,1], index: 2, kind: input, shape index: {}]
  %s3 = inlined_call_operand.vmem [shape: f32[1,8,128], index: 3, kind: output, shape index: {}]
  %s4 = sld [smem:[#allocation0]]
  $region49: #{forward.1} parent=0
    _
  %s6 = ssub.s32 1, %s4
  %s7 = scalar_select 0, %s6, %s4
  loop: start=0, step=1, limit=4
  $region2: #{forward.1} parent=0 // loop_pre_header
    _
  $region3: #{forward.1} parent=0 // loop_header
    %s9 = sphi 0, %s13
    %p10 = scmp.ge.s32.totalorder %s9, 4
    %s16 = sphi 0, %s28
    %s17 = sphi 0, %s24
    %s18 = sphi 0, %s16
    %s19 = sphi 0, %s17
    %s20 = sphi 0, %s18
    %s21 = sphi 0, %s19
    %s29 = sphi 0, %s29
    %s31 = sphi 0, %s29
    %s32 = sphi 0, %s31
    %s46 = sphi 0, %s32
    %s52 = sphi 0, %s54
    %s55 = sphi 0, %s52
    %s56 = sphi 0, %s55
    %s72 = sphi 0, %s56
    %s80 = sphi 0, %s82
    %s83 = sphi 0, %s80
    %s84 = sphi 0, %s83
    %s100 = sphi 0, %s84
    %s106 = sphi 0, %s108
    %s109 = sphi 0, %s106
    %s110 = sphi 0, %s109
    %s126 = sphi 0, %s110
  $region4: #{forward.1} parent=0 // loop_header_branch
    %12 = sbr.rel (%p10) target = $region8
  $region5: #{forward.1} parent=0 // loop_body
    %s14 = ssub.s32 %s9, 1
    %s15 = ssub.s32 %s9, 2
    %s22 = sadd.s32 1, %s17
    %p23 = scmp.ge.s32.totalorder %s22, 2
    %s24 = scalar_select %p23, 0, %s22
    %s25 = sadd.s32 1, %s16
    %s26 = scalar_select %p23, %s25, %s16
    %p27 = scmp.ge.s32.totalorder %s26, 1
    %s28 = scalar_select %p27, 0, %s26
    %s30 = sadd.s32 %s29, 1
    %p33 = scmp.eq.s32.totalorder %s9, 1
    %p34 = scmp.ne.s32.totalorder %s29, %s31
    %p35 = scmp.eq.s32.totalorder %s9, 0
    %p36 = por %p34, %p35
    %p37 = scmp.ne.s32.totalorder %s29, %s31
    %p38 = scmp.eq.s32.totalorder %s14, 1
    %p39 = por %p37, %p38
    %p40 = scmp.ne.s32.totalorder %s31, %s32
    %p41 = scmp.eq.s32.totalorder %s14, 0
    %p42 = por %p40, %p41
    %p43 = scmp.ne.s32.totalorder %s31, %s32
    %p44 = scmp.eq.s32.totalorder %s15, 1
    %p45 = por %p43, %p44
    %p47 = scmp.ne.s32.totalorder %s32, %s46
    %p48 = scmp.eq.s32.totalorder %s15, 0
    %p49 = por %p47, %p48
    %s50 = ssub.s32 %s16, %s28
    %p51 = scmp.eq.s32.totalorder %s50, 0
    %s53 = sadd.s32 %s52, 1
    %s54 = scalar_select %p51, %s52, %s53
    %p57 = pneg %p51
    %p58 = scmp.eq.s32.totalorder %s9, 1
    %p59 = por %p57, %p58
    %p60 = scmp.ne.s32.totalorder %s52, %s55
    %p61 = scmp.eq.s32.totalorder %s9, 0
    %p62 = por %p60, %p61
    %p63 = scmp.ne.s32.totalorder %s52, %s55
    %p64 = scmp.eq.s32.totalorder %s14, 1
    %p65 = por %p63, %p64
    %p66 = scmp.ne.s32.totalorder %s55, %s56
    %p67 = scmp.eq.s32.totalorder %s14, 0
    %p68 = por %p66, %p67
    %p69 = scmp.ne.s32.totalorder %s55, %s56
    %p70 = scmp.eq.s32.totalorder %s15, 1
    %p71 = por %p69, %p70
    %p73 = scmp.ne.s32.totalorder %s56, %s72
    %p74 = scmp.eq.s32.totalorder %s15, 0
    %p75 = por %p73, %p74
    %s76 = ssub.s32 %s17, %s24
    %s77 = ssub.s32 %s16, %s28
    %s78 = sor.u32 %s76, %s77
    %p79 = scmp.eq.s32.totalorder %s78, 0
    %s81 = sadd.s32 %s80, 1
    %s82 = scalar_select %p79, %s80, %s81
    %p85 = pneg %p79
    %p86 = scmp.eq.s32.totalorder %s9, 1
    %p87 = por %p85, %p86
    %p88 = scmp.ne.s32.totalorder %s80, %s83
    %p89 = scmp.eq.s32.totalorder %s9, 0
    %p90 = por %p88, %p89
    %p91 = scmp.ne.s32.totalorder %s80, %s83
    %p92 = scmp.eq.s32.totalorder %s14, 1
    %p93 = por %p91, %p92
    %p94 = scmp.ne.s32.totalorder %s83, %s84
    %p95 = scmp.eq.s32.totalorder %s14, 0
    %p96 = por %p94, %p95
    %p97 = scmp.ne.s32.totalorder %s83, %s84
    %p98 = scmp.eq.s32.totalorder %s15, 1
    %p99 = por %p97, %p98
    %p101 = scmp.ne.s32.totalorder %s84, %s100
    %p102 = scmp.eq.s32.totalorder %s15, 0
    %p103 = por %p101, %p102
    %s104 = ssub.s32 %s16, %s28
    %p105 = scmp.eq.s32.totalorder %s104, 0
    %s107 = sadd.s32 %s106, 1
    %s108 = scalar_select %p105, %s106, %s107
    %p111 = pneg %p105
    %p112 = scmp.eq.s32.totalorder %s9, 1
    %p113 = por %p111, %p112
    %p114 = scmp.ne.s32.totalorder %s106, %s109
    %p115 = scmp.eq.s32.totalorder %s9, 0
    %p116 = por %p114, %p115
    %p117 = scmp.ne.s32.totalorder %s106, %s109
    %p118 = scmp.eq.s32.totalorder %s14, 1
    %p119 = por %p117, %p118
    %p120 = scmp.ne.s32.totalorder %s109, %s110
    %p121 = scmp.eq.s32.totalorder %s14, 0
    %p122 = por %p120, %p121
    %p123 = scmp.ne.s32.totalorder %s109, %s110
    %p124 = scmp.eq.s32.totalorder %s15, 1
    %p125 = por %p123, %p124
    %p127 = scmp.ne.s32.totalorder %s110, %s126
    %p128 = scmp.eq.s32.totalorder %s15, 0
    %p129 = por %p127, %p128
    %p130 = scmp.le.s32.totalorder 1, %s9
    %p131 = scmp.lt.s32.totalorder %s9, 3
    %p132 = pnand %p130, %p131
    %p133 = pneg %p132
    // Predicated region
    $region9: #{forward.1} parent=5 // pred_check
      _
    $region10: #{forward.1} parent=5 // pred_check_branch
      %135 = sbr.rel (%p132) target = $region12
    $region11: #{forward.1} parent=5 // pred_region
      %s136 = ssub.s32 %s9, 1
      // Predicated region
      $region13: #{forward.1} parent=11 // pred_check
        %p137 = pneg %p42
      $region14: #{forward.1} parent=11 // pred_check_branch
        %139 = sbr.rel (%p137) target = $region16
      $region15: #{forward.1} parent=11 // pred_region
        _
      $region16: #{forward.1} parent=11 // pred_fallthru
        _
      // Predicated region
      $region17: #{forward.1} parent=11 // pred_check
        %p140 = pneg %p68
      $region18: #{forward.1} parent=11 // pred_check_branch
        %142 = sbr.rel (%p140) target = $region20
      $region19: #{forward.1} parent=11 // pred_region
        %s143 = smul.u32 16, %s18
        %p144 = scmp.lt.s32.totalorder %s143, 15
        %s145 = scalar_select %p144, %s143, 15
        %s146 = smul.addr %s145, 4
        %s147 = scalar_lea.vmem %s1, %s146
        %s148 = smul.u32 16, %s18
      $region20: #{forward.1} parent=11 // pred_fallthru
        _
    $region12: #{forward.1} parent=5 // pred_fallthru
      _
    %p149 = scmp.lt.s32.totalorder %s9, 2
    // Predicated region
    $region21: #{forward.1} parent=5 // pred_check
      %p150 = pneg %p149
    $region22: #{forward.1} parent=5 // pred_check_branch
      %152 = sbr.rel (%p150) target = $region24
    $region23: #{forward.1} parent=5 // pred_region
      // Predicated region
      $region25: #{forward.1} parent=23 // pred_check
        %p153 = pneg %p90
      $region26: #{forward.1} parent=23 // pred_check_branch
        %155 = sbr.rel (%p153) target = $region28
      $region27: #{forward.1} parent=23 // pred_region
        %s156 = smul.u32 16, %s16
        %p157 = scmp.lt.s32.totalorder %s17, 1
        %s158 = scalar_select %p157, %s17, 1
        %p159 = scmp.lt.s32.totalorder %s156, 15
        %s160 = scalar_select %p159, %s156, 15
        %s161 = smul.addr %s158, 16
        %s162 = sadd.s32 %s160, %s161
        %s163 = smul.addr %s162, 8
        %s164 = scalar_lea.vmem %s2, %s163
        %s165 = smul.u32 16, %s16
      $region28: #{forward.1} parent=23 // pred_fallthru
        _
    $region24: #{forward.1} parent=5 // pred_fallthru
      _
    %p166 = scmp.le.s32.totalorder 1, %s9
    %p167 = scmp.lt.s32.totalorder %s9, 3
    %p168 = pnand %p166, %p167
    %p169 = pneg %p168
    // Predicated region
    $region29: #{forward.1} parent=5 // pred_check
      _
    $region30: #{forward.1} parent=5 // pred_check_branch
      %171 = sbr.rel (%p168) target = $region32
    $region31: #{forward.1} parent=5 // pred_region
      %s172 = ssub.s32 %s9, 1
      %p173 = pneg %p42
      %p174 = pneg %p39
      %s175 = smul.u32 16, %s18
      %p176 = scmp.lt.s32.totalorder %s175, 15
      %s177 = scalar_select %p176, %s175, 15
      %s178 = smul.addr %s177, 4
      %s179 = scalar_lea.vmem %s1, %s178
      %p180 = pneg %p68
      %p181 = pneg %p65
      %s182 = smul.u32 16, %s18
      %p183 = scmp.lt.s32.totalorder %s19, 1
      %s184 = scalar_select %p183, %s19, 1
      %p185 = scmp.lt.s32.totalorder %s182, 15
      %s186 = scalar_select %p185, %s182, 15
      %s187 = smul.addr %s184, 16
      %s188 = sadd.s32 %s186, %s187
      %s189 = smul.addr %s188, 8
      %s190 = scalar_lea.vmem %s2, %s189
      %p191 = pneg %p96
      %p192 = pneg %p93
      %p193 = pneg %p122
      %p194 = pneg %p119
      %p195 = scmp.lt.s32.totalorder %s18, 0
      %s196 = scalar_select %p195, %s18, 0
      %s197 = smul.addr %s196, 8
      %s198 = scalar_lea.vmem %s3, %s197
      %s199 = smul.u32 16, %s18
      %p200 = scmp.lt.s32.totalorder %s199, 15
      %s201 = scalar_select %p200, %s199, 15
      %s202 = smul.addr %s201, 4
      %s203 = scalar_lea.vmem %s1, %s202
      %s204 = smul.u32 16, %s18
      %s205 = smul.u32 16, %s18
      %p206 = scmp.lt.s32.totalorder %s19, 1
      %s207 = scalar_select %p206, %s19, 1
      %p208 = scmp.lt.s32.totalorder %s205, 15
      %s209 = scalar_select %p208, %s205, 15
      %s210 = smul.addr %s207, 16
      %s211 = sadd.s32 %s209, %s210
      %s212 = smul.addr %s211, 8
      %s213 = scalar_lea.vmem %s2, %s212
      %s214 = smul.u32 16, %s18
      %p215 = scmp.lt.s32.totalorder %s18, 0
      %s216 = scalar_select %p215, %s18, 0
      %s217 = smul.addr %s216, 8
      %s218 = scalar_lea.vmem %s3, %s217
      %p219 = scmp.eq.s32.totalorder %s19, 0
      // Predicated region
      $region33: #{forward.1} parent=31 // pred_check
        %p220 = pneg %p219
      $region34: #{forward.1} parent=31 // pred_check_branch
        %222 = sbr.rel (%p220) target = $region36
      $region35: #{forward.1} parent=31 // pred_region
        %223 = vst [vmem:[%s218] sm:$0xff] 0.0
      $region36: #{forward.1} parent=31 // pred_fallthru
        _
      %v224 = vld [vmem:[%s203] sm:$0xf]
      %v225 = vld [vmem:[%s203 + $0x4] sm:$0xf]
      %v226 = vld [vmem:[%s203 + $0x8] sm:$0xf]
      %v227 = vld [vmem:[%s203 + $0xc] sm:$0xf]
      %v228 = vld [vmem:[%s203 + $0x10] sm:$0xf]
      %v229 = vld [vmem:[%s203 + $0x14] sm:$0xf]
      %v230 = vld [vmem:[%s203 + $0x18] sm:$0xf]
      %v231 = vld [vmem:[%s203 + $0x1c] sm:$0xf]
      %v232 = vld [vmem:[%s203 + $0x20] sm:$0xf]
      %v233 = vld [vmem:[%s203 + $0x24] sm:$0xf]
      %v234 = vld [vmem:[%s203 + $0x28] sm:$0xf]
      %v235 = vld [vmem:[%s203 + $0x2c] sm:$0xf]
      %v236 = vld [vmem:[%s203 + $0x30] sm:$0xf]
      %v237 = vld [vmem:[%s203 + $0x34] sm:$0xf]
      %v238 = vld [vmem:[%s203 + $0x38] sm:$0xf]
      %v239 = vld [vmem:[%s203 + $0x3c] sm:$0xf]
      %v240 = vunpack.c.l.bf16 %v224
      %v241 = vunpack.c.l.bf16 %v225
      %v242 = vunpack.c.l.bf16 %v226
      %v243 = vunpack.c.l.bf16 %v227
      %v244 = vunpack.c.l.bf16 %v228
      %v245 = vunpack.c.l.bf16 %v229
      %v246 = vunpack.c.l.bf16 %v230
      %v247 = vunpack.c.l.bf16 %v231
      %v248 = vunpack.c.l.bf16 %v232
      %v249 = vunpack.c.l.bf16 %v233
      %v250 = vunpack.c.l.bf16 %v234
      %v251 = vunpack.c.l.bf16 %v235
      %v252 = vunpack.c.l.bf16 %v236
      %v253 = vunpack.c.l.bf16 %v237
      %v254 = vunpack.c.l.bf16 %v238
      %v255 = vunpack.c.l.bf16 %v239
      %s256 = scalar_lea.vmem %s0, %s19
      %v257 = vld [vmem:[%s256] sm:$0x1]
      %v258 = vlaneseq
      %v259 = vshrl.u32 %v258, 7
      %v260 = vsub.s32 0, %v259
      %v261 = vrot.slane %v257, %v260
      %v262 = vmul.f32 %v261, %v240
      %v263 = vmul.f32 %v261, %v241
      %v264 = vmul.f32 %v261, %v242
      %v265 = vmul.f32 %v261, %v243
      %v266 = vmul.f32 %v261, %v244
      %v267 = vmul.f32 %v261, %v245
      %v268 = vmul.f32 %v261, %v246
      %v269 = vmul.f32 %v261, %v247
      %v270 = vmul.f32 %v261, %v248
      %v271 = vmul.f32 %v261, %v249
      %v272 = vmul.f32 %v261, %v250
      %v273 = vmul.f32 %v261, %v251
      %v274 = vmul.f32 %v261, %v252
      %v275 = vmul.f32 %v261, %v253
      %v276 = vmul.f32 %v261, %v254
      %v277 = vmul.f32 %v261, %v255
      %278 = vmax.xlane.f32.xlu0 %v262
      %v279 = vpop.xlane.xlu0 %278
      %280 = vmax.xlane.f32.xlu0 %v263
      %v281 = vpop.xlane.xlu0 %280
      %282 = vmax.xlane.f32.xlu0 %v264
      %v283 = vpop.xlane.xlu0 %282
      %284 = vmax.xlane.f32.xlu0 %v265
      %v285 = vpop.xlane.xlu0 %284
      %286 = vmax.xlane.f32.xlu0 %v266
      %v287 = vpop.xlane.xlu0 %286
      %288 = vmax.xlane.f32.xlu0 %v267
      %v289 = vpop.xlane.xlu0 %288
      %290 = vmax.xlane.f32.xlu0 %v268
      %v291 = vpop.xlane.xlu0 %290
      %292 = vmax.xlane.f32.xlu0 %v269
      %v293 = vpop.xlane.xlu0 %292
      %294 = vmax.xlane.f32.xlu0 %v270
      %v295 = vpop.xlane.xlu0 %294
      %296 = vmax.xlane.f32.xlu0 %v271
      %v297 = vpop.xlane.xlu0 %296
      %298 = vmax.xlane.f32.xlu0 %v272
      %v299 = vpop.xlane.xlu0 %298
      %300 = vmax.xlane.f32.xlu0 %v273
      %v301 = vpop.xlane.xlu0 %300
      %302 = vmax.xlane.f32.xlu0 %v274
      %v303 = vpop.xlane.xlu0 %302
      %304 = vmax.xlane.f32.xlu0 %v275
      %v305 = vpop.xlane.xlu0 %304
      %306 = vmax.xlane.f32.xlu0 %v276
      %v307 = vpop.xlane.xlu0 %306
      %308 = vmax.xlane.f32.xlu0 %v277
      %v309 = vpop.xlane.xlu0 %308
      %v310 = vld [vmem:[%s213] sm:$0xff]
      %v311 = vld [vmem:[%s213 + $0x8] sm:$0xff]
      %v312 = vld [vmem:[%s213 + $0x10] sm:$0xff]
      %v313 = vld [vmem:[%s213 + $0x18] sm:$0xff]
      %v314 = vld [vmem:[%s213 + $0x20] sm:$0xff]
      %v315 = vld [vmem:[%s213 + $0x28] sm:$0xff]
      %v316 = vld [vmem:[%s213 + $0x30] sm:$0xff]
      %v317 = vld [vmem:[%s213 + $0x38] sm:$0xff]
      %v318 = vld [vmem:[%s213 + $0x40] sm:$0xff]
      %v319 = vld [vmem:[%s213 + $0x48] sm:$0xff]
      %v320 = vld [vmem:[%s213 + $0x50] sm:$0xff]
      %v321 = vld [vmem:[%s213 + $0x58] sm:$0xff]
      %v322 = vld [vmem:[%s213 + $0x60] sm:$0xff]
      %v323 = vld [vmem:[%s213 + $0x68] sm:$0xff]
      %v324 = vld [vmem:[%s213 + $0x70] sm:$0xff]
      %v325 = vld [vmem:[%s213 + $0x78] sm:$0xff]
      %v326 = vsub.f32 1.0, %v279
      %v327 = vsub.f32 1.0, %v281
      %v328 = vsub.f32 1.0, %v283
      %v329 = vsub.f32 1.0, %v285
      %v330 = vsub.f32 1.0, %v287
      %v331 = vsub.f32 1.0, %v289
      %v332 = vsub.f32 1.0, %v291
      %v333 = vsub.f32 1.0, %v293
      %v334 = vsub.f32 1.0, %v295
      %v335 = vsub.f32 1.0, %v297
      %v336 = vsub.f32 1.0, %v299
      %v337 = vsub.f32 1.0, %v301
      %v338 = vsub.f32 1.0, %v303
      %v339 = vsub.f32 1.0, %v305
      %v340 = vsub.f32 1.0, %v307
      %v341 = vsub.f32 1.0, %v309
      %v342 = vmul.f32 %v310, %v326
      %v343 = vmul.f32 %v311, %v327
      %v344 = vmul.f32 %v312, %v328
      %v345 = vmul.f32 %v313, %v329
      %v346 = vmul.f32 %v314, %v330
      %v347 = vmul.f32 %v315, %v331
      %v348 = vmul.f32 %v316, %v332
      %v349 = vmul.f32 %v317, %v333
      %v350 = vmul.f32 %v318, %v334
      %v351 = vmul.f32 %v319, %v335
      %v352 = vmul.f32 %v320, %v336
      %v353 = vmul.f32 %v321, %v337
      %v354 = vmul.f32 %v322, %v338
      %v355 = vmul.f32 %v323, %v339
      %v356 = vmul.f32 %v324, %v340
      %v357 = vmul.f32 %v325, %v341
      %vm358 = vcmask 7168
      %v359 = vsel %vm358, %v342, 0.0
      %v360 = vsel %vm358, %v343, 0.0
      %v361 = vadd.f32 %v359, %v360
      %v362 = vsel %vm358, %v344, 0.0
      %v363 = vadd.f32 %v361, %v362
      %v364 = vsel %vm358, %v345, 0.0
      %v365 = vadd.f32 %v363, %v364
      %v366 = vsel %vm358, %v346, 0.0
      %v367 = vadd.f32 %v365, %v366
      %v368 = vsel %vm358, %v347, 0.0
      %v369 = vadd.f32 %v367, %v368
      %v370 = vsel %vm358, %v348, 0.0
      %v371 = vadd.f32 %v369, %v370
      %v372 = vsel %vm358, %v349, 0.0
      %v373 = vadd.f32 %v371, %v372
      %v374 = vsel %vm358, %v350, 0.0
      %v375 = vadd.f32 %v373, %v374
      %v376 = vsel %vm358, %v351, 0.0
      %v377 = vadd.f32 %v375, %v376
      %v378 = vsel %vm358, %v352, 0.0
      %v379 = vadd.f32 %v377, %v378
      %v380 = vsel %vm358, %v353, 0.0
      %v381 = vadd.f32 %v379, %v380
      %v382 = vsel %vm358, %v354, 0.0
      %v383 = vadd.f32 %v381, %v382
      %v384 = vsel %vm358, %v355, 0.0
      %v385 = vadd.f32 %v383, %v384
      %v386 = vsel %vm358, %v356, 0.0
      %v387 = vadd.f32 %v385, %v386
      %v388 = vsel %vm358, %v357, 0.0
      %v389 = vadd.f32 %v387, %v388
      %390 = vadd.xlane.f32.xlu0 %v389
      %v391 = vpop.xlane.xlu0 %390
      %v392 = vrot.slane %v391, 4
      %v393 = vadd.f32 %v391, %v392
      %v394 = vrot.slane %v393, 2
      %v395 = vadd.f32 %v393, %v394
      %v396 = vrot.slane %v395, 1
      %v397 = vadd.f32 %v395, %v396
      %s398 = vtos %v397
      %v399 = vstv %s398
      %v400 = vadd.f32 %v399, 0.0
      %v401 = vld [vmem:[%s218] sm:$0xff]
      %v402 = vadd.f32 %v401, %v400
      %403 = vst [vmem:[%s218] sm:$0xff] %v402
      %p404 = scmp.lt.s32.totalorder %s18, 0
      %s405 = scalar_select %p404, %s18, 0
      %s406 = smul.addr %s405, 8
      %s407 = scalar_lea.vmem %s3, %s406
      // Predicated region
      $region37: #{forward.1} parent=31 // pred_check
        %p408 = pneg %p119
      $region38: #{forward.1} parent=31 // pred_check_branch
        %410 = sbr.rel (%p408) target = $region40
      $region39: #{forward.1} parent=31 // pred_region
        _
      $region40: #{forward.1} parent=31 // pred_fallthru
        _
      // Predicated region
      $region41: #{forward.1} parent=31 // pred_check
        %p411 = pneg %p119
      $region42: #{forward.1} parent=31 // pred_check_branch
        %413 = sbr.rel (%p411) target = $region44
      $region43: #{forward.1} parent=31 // pred_region
        %p414 = scmp.lt.s32.totalorder %s18, 0
        %s415 = scalar_select %p414, %s18, 0
        %s416 = smul.addr %s415, 8
        %s417 = scalar_lea.vmem %s3, %s416
      $region44: #{forward.1} parent=31 // pred_fallthru
        _
    $region32: #{forward.1} parent=5 // pred_fallthru
      _
    %p418 = scmp.le.s32.totalorder 2, %s9
    // Predicated region
    $region45: #{forward.1} parent=5 // pred_check
      %p419 = pneg %p418
    $region46: #{forward.1} parent=5 // pred_check_branch
      %421 = sbr.rel (%p419) target = $region48
    $region47: #{forward.1} parent=5 // pred_region
      %s422 = ssub.s32 %s9, 2
    $region48: #{forward.1} parent=5 // pred_fallthru
      _
  $region6: #{forward.1} parent=0 // loop_footer
    %s13 = sadd.s32 1, %s9
  $region7: #{forward.1} parent=0 // loop_footer_branch
    %8 = sbr.rel target = $region3
  $region8: #{forward.1} parent=0 // loop_exit
    _

</llo_original>
